<compile_context>
chip_gen: v7x
topology: tpu7x:2x2x1
jax: 0.10.0
libtpu: 0.0.40
codegen_flags: <defaults>
</compile_context>

<pallas_src>
import jax
import jax.numpy as jnp
from jax.experimental import pallas as pl
from jax.experimental.pallas import tpu as pltpu


def _cam_kernel(x_ref,
                w1_ref, b1_ref, w2_ref, b2_ref,
                w3_ref, b3_ref, w4_ref, b4_ref,
                o_ref):
    x = x_ref[...]                                   # (BB, L, C) in matmul dtype
    BB, L, C = x.shape
    mm = x.dtype

    # ---- global average pool over L (AdaptiveAvgPool1d(1)), f32 accumulation ----
    x_avg = jnp.sum(x.astype(jnp.float32), axis=1) * (1.0 / L)          # (BB, C)

    # ---- squeeze-excite path, batched over BB (single M=BB matmul chain) ----
    a = jnp.dot(x_avg.astype(mm), w1_ref[...],
                preferred_element_type=jnp.float32) + b1_ref[...]       # (BB, Cr)
    a = jnp.maximum(a, 0.0)                                             # relu
    a = jnp.dot(a.astype(mm), w2_ref[...],
                preferred_element_type=jnp.float32) + b2_ref[...]       # (BB, C)

    # ---- pointwise-conv path on the flattened (BB*L, C) slab ----
    x2 = x.reshape(BB * L, C)                        # collapse leading dims (no relayout)
    c = jnp.dot(x2, w3_ref[...],
                preferred_element_type=jnp.float32) + b3_ref[...]       # (BB*L, Cr)
    c = jnp.maximum(c, 0.0)                                             # relu
    c = jnp.dot(c.astype(mm), w4_ref[...],
                preferred_element_type=jnp.float32) + b4_ref[...]       # (BB*L, C)
    c = c.reshape(BB, L, C)

    # ---- gate (f32 epilogue: sigmoid + multiply) ----
    gate = jax.nn.sigmoid(a[:, None, :] + c)         # broadcast (BB,1,C) over L
    o_ref[...] = (gate * x.astype(jnp.float32)).astype(o_ref.dtype)


def _pick_batch_tile(B, L, C, itemsize, target_rows=256, tile_budget=2 << 20):
    """Largest divisor of B whose (bb*L, C) x-tile fits the VMEM tile budget;
    when work is plentiful, keep >= 2 grid steps so v7x's 2nd TensorCore is busy."""
    divisors = [d for d in range(1, B + 1) if B % d == 0]
    fitting = [d for d in divisors if d * L * C * itemsize <= tile_budget] or [1]
    bb = max(fitting)
    if bb == B and B > 1 and (B // 2) * L >= target_rows:
        bb = max(d for d in divisors if d < B)
    return bb


def cam_forward(x_blc, folded, *, matmul_dtype=jnp.float32):
    """x_blc: (B, L, C) channels-last input.  folded: BN-folded conv params.
    Returns (B, L, C) in x_blc.dtype."""
    B, L, C = x_blc.shape
    Cr = folded["w1"].shape[1]
    mm_itemsize = jnp.dtype(matmul_dtype).itemsize

    BB = _pick_batch_tile(B, L, C, mm_itemsize)
    grid = (B // BB,)

    # MXU operands in matmul_dtype (bf16 on v6e/v7x also halves HBM/VMEM traffic
    # for x and the weights); biases stay f32 -> added onto f32 accumulators.
    x_in = x_blc.astype(matmul_dtype)
    w = {k: folded[k].astype(matmul_dtype) for k in ("w1", "w2", "w3", "w4")}
    b = {k: folded[k].astype(jnp.float32) for k in ("b1", "b2", "b3", "b4")}

    def wspec(shape):
        return pl.BlockSpec(shape, lambda i: (0, 0))

    in_specs = [
        pl.BlockSpec((BB, L, C), lambda i: (i, 0, 0)),   # x batch-tile
        wspec((C, Cr)), wspec((1, Cr)),                  # conv1 (bn1 folded)
        wspec((Cr, C)), wspec((1, C)),                   # conv2 (bn2 folded)
        wspec((C, Cr)), wspec((1, Cr)),                  # conv3 (bn3 folded)
        wspec((Cr, C)), wspec((1, C)),                   # conv4 (bn4 folded)
    ]
    out_specs = pl.BlockSpec((BB, L, C), lambda i: (i, 0, 0))

    # Explicit scoped-VMEM limit: input + output tiles, double-buffered, plus
    # headroom for intermediates — kept well under v7x's 64 MiB physical VMEM.
    tile_bytes = BB * L * C * (mm_itemsize + jnp.dtype(x_blc.dtype).itemsize)
    vmem_limit = int(min(48 << 20, max(16 << 20, 8 * tile_bytes)))

    return pl.pallas_call(
        _cam_kernel,
        out_shape=jax.ShapeDtypeStruct((B, L, C), x_blc.dtype),
        grid_spec=pltpu.PrefetchScalarGridSpec(
            num_scalar_prefetch=0,
            grid=grid,
            in_specs=in_specs,
            out_specs=out_specs,
        ),
        compiler_params=pltpu.CompilerParams(
            dimension_semantics=("parallel",),
            vmem_limit_bytes=vmem_limit),
    )(x_in,
      w["w1"], b["b1"], w["w2"], b["b2"],
      w["w3"], b["b3"], w["w4"], b["b4"])


def init_params(key, embed_dim, r=4, eps=1e-5):
    """Deterministic synthetic Conv1d(.,.,1) + BatchNorm1d(eval) parameters.
    Conv1d weight (out,in,1) is stored transposed as (in,out) so the kernel does
    x @ W.  BN carries non-trivial running stats so the fold is exercised."""
    Cr = embed_dim // r
    keys = jax.random.split(key, 24)

    def conv(kw, kb, cin, cout):
        wgt = jax.random.normal(kw, (cin, cout), jnp.float32) * 0.1
        bias = jax.random.normal(kb, (1, cout), jnp.float32) * 0.1
        return wgt, bias

    def bn(kg, kb, km, kv, c):
        gamma = 1.0 + 0.1 * jax.random.normal(kg, (1, c), jnp.float32)
        beta = 0.1 * jax.random.normal(kb, (1, c), jnp.float32)
        mean = 0.1 * jax.random.normal(km, (1, c), jnp.float32)
        var = 0.5 + jax.random.uniform(kv, (1, c), jnp.float32)
        return gamma, beta, mean, var

    p = {"eps": eps}
    p["w1"], p["b1"] = conv(keys[0], keys[1], embed_dim, Cr)
    p["g1"], p["be1"], p["m1"], p["v1"] = bn(keys[2], keys[3], keys[4], keys[5], Cr)
    p["w2"], p["b2"] = conv(keys[6], keys[7], Cr, embed_dim)
    p["g2"], p["be2"], p["m2"], p["v2"] = bn(keys[8], keys[9], keys[10], keys[11], embed_dim)
    p["w3"], p["b3"] = conv(keys[12], keys[13], embed_dim, Cr)
    p["g3"], p["be3"], p["m3"], p["v3"] = bn(keys[14], keys[15], keys[16], keys[17], Cr)
    p["w4"], p["b4"] = conv(keys[18], keys[19], Cr, embed_dim)
    p["g4"], p["be4"], p["m4"], p["v4"] = bn(keys[20], keys[21], keys[22], keys[23], embed_dim)
    return p


def fold_bn_into_conv(p):
    """BN(conv(x)) == x @ (W*scale) + (b*scale + shift) for eval-mode BN, with
    scale = gamma/sqrt(running_var+eps), shift = beta - running_mean*scale."""
    eps = p["eps"]

    def fold(w, b, g, beta, m, v):
        scale = g / jnp.sqrt(v + eps)                # (1, cout)
        shift = beta - m * scale
        return w * scale, b * scale + shift

    out = {}
    for i in range(1, 5):
        out[f"w{i}"], out[f"b{i}"] = fold(
            p[f"w{i}"], p[f"b{i}"],
            p[f"g{i}"], p[f"be{i}"], p[f"m{i}"], p[f"v{i}"])
    return out


def cam_reference(x_blc, p):
    """Pure-JAX reference with UNfolded conv + eval-mode BN (same math as the
    PyTorch module in eval mode), used to validate the folded kernel."""
    eps = p["eps"]

    def bn(y, g, beta, m, v):
        return (y - m) * (g / jnp.sqrt(v + eps)) + beta

    x_avg = jnp.mean(x_blc, axis=1, keepdims=True)                        # (B,1,C)
    a = jnp.einsum("blc,cr->blr", x_avg, p["w1"]) + p["b1"]
    a = jnp.maximum(bn(a, p["g1"], p["be1"], p["m1"], p["v1"]), 0.0)
    a = jnp.einsum("blr,rc->blc", a, p["w2"]) + p["b2"]
    a = bn(a, p["g2"], p["be2"], p["m2"], p["v2"])
    c = jnp.einsum("blc,cr->blr", x_blc, p["w3"]) + p["b3"]
    c = jnp.maximum(bn(c, p["g3"], p["be3"], p["m3"], p["v3"]), 0.0)
    c = jnp.einsum("blr,rc->blc", c, p["w4"]) + p["b4"]
    c = bn(c, p["g4"], p["be4"], p["m4"], p["v4"])
    return jax.nn.sigmoid(a + c) * x_blc


if __name__ == "__main__":
    key = jax.random.PRNGKey(0)
    kx, kp = jax.random.split(key)

    B, C, L = 2, 32, 16        # embed_dim = 32, r = 4, sequence length = 16
    x_ncl = jax.random.normal(kx, (B, C, L), jnp.float32)   # PyTorch Conv1d layout

    params = init_params(kp, embed_dim=C, r=4)
    folded = fold_bn_into_conv(params)

    x_blc = jnp.transpose(x_ncl, (0, 2, 1))                 # channels-last for kernel
    ref_blc = cam_reference(x_blc, params)

    # f32 MXU-operand path: tight check against the unfolded eval-mode reference.
    out_blc = cam_forward(x_blc, folded, matmul_dtype=jnp.float32)
    jax.block_until_ready(out_blc)
    assert jnp.allclose(out_blc, ref_blc, atol=1e-4, rtol=1e-4), "f32 mismatch vs reference"

    # bf16 MXU-operand path (v6e/v7x fast path; pooling + gate stay f32): loose check.
    out_bf16 = cam_forward(x_blc, folded, matmul_dtype=jnp.bfloat16)
    jax.block_until_ready(out_bf16)
    assert float(jnp.max(jnp.abs(out_bf16 - ref_blc))) < 1e-1, "bf16 path drifted too far"

    out_ncl = jnp.transpose(out_blc, (0, 2, 1))             # back to (B, C, L)
    jax.block_until_ready(out_ncl)
    print("KERNEL_OK")
</pallas_src>

<mosaic_0001>
module attributes {stable_mosaic.version = 11 : i64} {
  func.func @_cam_kernel(%arg0: i32, %arg1: memref<2x16x32xf32, #tpu.memory_space<vmem>>, %arg2: memref<32x8xf32, #tpu.memory_space<vmem>>, %arg3: memref<1x8xf32, #tpu.memory_space<vmem>>, %arg4: memref<8x32xf32, #tpu.memory_space<vmem>>, %arg5: memref<1x32xf32, #tpu.memory_space<vmem>>, %arg6: memref<32x8xf32, #tpu.memory_space<vmem>>, %arg7: memref<1x8xf32, #tpu.memory_space<vmem>>, %arg8: memref<8x32xf32, #tpu.memory_space<vmem>>, %arg9: memref<1x32xf32, #tpu.memory_space<vmem>>, %arg10: memref<2x16x32xf32, #tpu.memory_space<vmem>>) attributes {dimension_semantics = [#tpu.dimension_semantics<parallel>], iteration_bounds = array<i64: 1>, scalar_prefetch = 0 : i64, scratch_operands = 0 : i64, tpu.core_type = #tpu.core_type<tc>, window_params = [{transform_indices = @transform_0, window_bounds = array<i64: 2, 16, 32>}, {pipeline_mode = #tpu.pipeline_mode<synchronous>, transform_indices = @transform_1, window_bounds = array<i64: 32, 8>}, {pipeline_mode = #tpu.pipeline_mode<synchronous>, transform_indices = @transform_2, window_bounds = array<i64: 1, 8>}, {pipeline_mode = #tpu.pipeline_mode<synchronous>, transform_indices = @transform_3, window_bounds = array<i64: 8, 32>}, {pipeline_mode = #tpu.pipeline_mode<synchronous>, transform_indices = @transform_4, window_bounds = array<i64: 1, 32>}, {pipeline_mode = #tpu.pipeline_mode<synchronous>, transform_indices = @transform_5, window_bounds = array<i64: 32, 8>}, {pipeline_mode = #tpu.pipeline_mode<synchronous>, transform_indices = @transform_6, window_bounds = array<i64: 1, 8>}, {pipeline_mode = #tpu.pipeline_mode<synchronous>, transform_indices = @transform_7, window_bounds = array<i64: 8, 32>}, {pipeline_mode = #tpu.pipeline_mode<synchronous>, transform_indices = @transform_8, window_bounds = array<i64: 1, 32>}, {transform_indices = @transform_9, window_bounds = array<i64: 2, 16, 32>}]} {
    %c0 = arith.constant 0 : index
    %c0_0 = arith.constant 0 : index
    %c0_1 = arith.constant 0 : index
    %0 = vector.load %arg1[%c0, %c0_0, %c0_1] : memref<2x16x32xf32, #tpu.memory_space<vmem>>, vector<2x16x32xf32>
    %cst = arith.constant dense<0.000000e+00> : vector<2x32xf32>
    %1 = vector.multi_reduction <add>, %0, %cst [1] : vector<2x16x32xf32> to vector<2x32xf32>
    %cst_2 = arith.constant 6.250000e-02 : f32
    %2 = vector.broadcast %cst_2 : f32 to vector<2x32xf32>
    %3 = arith.mulf %1, %2 : vector<2x32xf32>
    %c0_3 = arith.constant 0 : index
    %c0_4 = arith.constant 0 : index
    %4 = vector.load %arg2[%c0_3, %c0_4] : memref<32x8xf32, #tpu.memory_space<vmem>>, vector<32x8xf32>
    %cst_5 = arith.constant dense<0.000000e+00> : vector<2x8xf32>
    %5 = tpu.matmul %3, %4, %cst_5 {dimension_numbers = #tpu.dot_dimension_numbers<[1], [0], [0], [1], [0, 0, 1, 1], [], []>} : vector<2x32xf32>, vector<32x8xf32>, vector<2x8xf32> -> vector<2x8xf32>
    %c0_6 = arith.constant 0 : index
    %c0_7 = arith.constant 0 : index
    %6 = vector.load %arg3[%c0_6, %c0_7] : memref<1x8xf32, #tpu.memory_space<vmem>>, vector<1x8xf32>
    %7 = vector.broadcast %6 : vector<1x8xf32> to vector<2x8xf32>
    %8 = arith.addf %5, %7 : vector<2x8xf32>
    %cst_8 = arith.constant 0.000000e+00 : f32
    %9 = vector.broadcast %cst_8 : f32 to vector<2x8xf32>
    %10 = arith.maximumf %8, %9 : vector<2x8xf32>
    %c0_9 = arith.constant 0 : index
    %c0_10 = arith.constant 0 : index
    %11 = vector.load %arg4[%c0_9, %c0_10] : memref<8x32xf32, #tpu.memory_space<vmem>>, vector<8x32xf32>
    %cst_11 = arith.constant dense<0.000000e+00> : vector<2x32xf32>
    %12 = tpu.matmul %10, %11, %cst_11 {dimension_numbers = #tpu.dot_dimension_numbers<[1], [0], [0], [1], [0, 0, 1, 1], [], []>} : vector<2x8xf32>, vector<8x32xf32>, vector<2x32xf32> -> vector<2x32xf32>
    %c0_12 = arith.constant 0 : index
    %c0_13 = arith.constant 0 : index
    %13 = vector.load %arg5[%c0_12, %c0_13] : memref<1x32xf32, #tpu.memory_space<vmem>>, vector<1x32xf32>
    %14 = vector.broadcast %13 : vector<1x32xf32> to vector<2x32xf32>
    %15 = arith.addf %12, %14 : vector<2x32xf32>
    %16 = vector.shape_cast %0 : vector<2x16x32xf32> to vector<32x32xf32>
    %c0_14 = arith.constant 0 : index
    %c0_15 = arith.constant 0 : index
    %17 = vector.load %arg6[%c0_14, %c0_15] : memref<32x8xf32, #tpu.memory_space<vmem>>, vector<32x8xf32>
    %cst_16 = arith.constant dense<0.000000e+00> : vector<32x8xf32>
    %18 = tpu.matmul %16, %17, %cst_16 {dimension_numbers = #tpu.dot_dimension_numbers<[1], [0], [0], [1], [0, 0, 1, 1], [], []>} : vector<32x32xf32>, vector<32x8xf32>, vector<32x8xf32> -> vector<32x8xf32>
    %c0_17 = arith.constant 0 : index
    %c0_18 = arith.constant 0 : index
    %19 = vector.load %arg7[%c0_17, %c0_18] : memref<1x8xf32, #tpu.memory_space<vmem>>, vector<1x8xf32>
    %20 = vector.broadcast %19 : vector<1x8xf32> to vector<32x8xf32>
    %21 = arith.addf %18, %20 : vector<32x8xf32>
    %cst_19 = arith.constant 0.000000e+00 : f32
    %22 = vector.broadcast %cst_19 : f32 to vector<32x8xf32>
    %23 = arith.maximumf %21, %22 : vector<32x8xf32>
    %c0_20 = arith.constant 0 : index
    %c0_21 = arith.constant 0 : index
    %24 = vector.load %arg8[%c0_20, %c0_21] : memref<8x32xf32, #tpu.memory_space<vmem>>, vector<8x32xf32>
    %cst_22 = arith.constant dense<0.000000e+00> : vector<32x32xf32>
    %25 = tpu.matmul %23, %24, %cst_22 {dimension_numbers = #tpu.dot_dimension_numbers<[1], [0], [0], [1], [0, 0, 1, 1], [], []>} : vector<32x8xf32>, vector<8x32xf32>, vector<32x32xf32> -> vector<32x32xf32>
    %c0_23 = arith.constant 0 : index
    %c0_24 = arith.constant 0 : index
    %26 = vector.load %arg9[%c0_23, %c0_24] : memref<1x32xf32, #tpu.memory_space<vmem>>, vector<1x32xf32>
    %27 = vector.broadcast %26 : vector<1x32xf32> to vector<32x32xf32>
    %28 = arith.addf %25, %27 : vector<32x32xf32>
    %29 = vector.shape_cast %28 : vector<32x32xf32> to vector<2x16x32xf32>
    %30 = vector.shape_cast %15 : vector<2x32xf32> to vector<2x1x32xf32>
    %31 = vector.broadcast %30 : vector<2x1x32xf32> to vector<2x16x32xf32>
    %32 = arith.addf %31, %29 : vector<2x16x32xf32>
    %33 = arith.negf %32 : vector<2x16x32xf32>
    %34 = math.exp %33 : vector<2x16x32xf32>
    %cst_25 = arith.constant 1.000000e+00 : f32
    %35 = vector.broadcast %cst_25 : f32 to vector<2x16x32xf32>
    %36 = arith.addf %35, %34 : vector<2x16x32xf32>
    %37 = arith.divf %35, %36 : vector<2x16x32xf32>
    %38 = arith.mulf %37, %0 : vector<2x16x32xf32>
    %c0_26 = arith.constant 0 : index
    %c0_27 = arith.constant 0 : index
    %c0_28 = arith.constant 0 : index
    %39 = vector.load %arg10[%c0_26, %c0_27, %c0_28] : memref<2x16x32xf32, #tpu.memory_space<vmem>>, vector<2x16x32xf32>
    tpu.vector_store %arg10[%c0_26, %c0_27, %c0_28], %38 {strides = array<i32>} : memref<2x16x32xf32, #tpu.memory_space<vmem>>, vector<2x16x32xf32>,
    return
  }
  func.func @transform_0(%arg0: i32) -> (i32, i32, i32) {
    %c0_i32 = arith.constant 0 : i32
    %c0_i32_0 = arith.constant 0 : i32
    %c0_i32_1 = arith.constant 0 : i32
    return %arg0, %c0_i32, %c0_i32_0 : i32, i32, i32
  }
  func.func @transform_1(%arg0: i32) -> (i32, i32) {
    %c0_i32 = arith.constant 0 : i32
    %c0_i32_0 = arith.constant 0 : i32
    %c0_i32_1 = arith.constant 0 : i32
    return %c0_i32, %c0_i32_0 : i32, i32
  }
  func.func @transform_2(%arg0: i32) -> (i32, i32) {
    %c0_i32 = arith.constant 0 : i32
    %c0_i32_0 = arith.constant 0 : i32
    %c0_i32_1 = arith.constant 0 : i32
    return %c0_i32, %c0_i32_0 : i32, i32
  }
  func.func @transform_3(%arg0: i32) -> (i32, i32) {
    %c0_i32 = arith.constant 0 : i32
    %c0_i32_0 = arith.constant 0 : i32
    %c0_i32_1 = arith.constant 0 : i32
    return %c0_i32, %c0_i32_0 : i32, i32
  }
  func.func @transform_4(%arg0: i32) -> (i32, i32) {
    %c0_i32 = arith.constant 0 : i32
    %c0_i32_0 = arith.constant 0 : i32
    %c0_i32_1 = arith.constant 0 : i32
    return %c0_i32, %c0_i32_0 : i32, i32
  }
  func.func @transform_5(%arg0: i32) -> (i32, i32) {
    %c0_i32 = arith.constant 0 : i32
    %c0_i32_0 = arith.constant 0 : i32
    %c0_i32_1 = arith.constant 0 : i32
    return %c0_i32, %c0_i32_0 : i32, i32
  }
  func.func @transform_6(%arg0: i32) -> (i32, i32) {
    %c0_i32 = arith.constant 0 : i32
    %c0_i32_0 = arith.constant 0 : i32
    %c0_i32_1 = arith.constant 0 : i32
    return %c0_i32, %c0_i32_0 : i32, i32
  }
  func.func @transform_7(%arg0: i32) -> (i32, i32) {
    %c0_i32 = arith.constant 0 : i32
    %c0_i32_0 = arith.constant 0 : i32
    %c0_i32_1 = arith.constant 0 : i32
    return %c0_i32, %c0_i32_0 : i32, i32
  }
  func.func @transform_8(%arg0: i32) -> (i32, i32) {
    %c0_i32 = arith.constant 0 : i32
    %c0_i32_0 = arith.constant 0 : i32
    %c0_i32_1 = arith.constant 0 : i32
    return %c0_i32, %c0_i32_0 : i32, i32
  }
  func.func @transform_9(%arg0: i32) -> (i32, i32, i32) {
    %c0_i32 = arith.constant 0 : i32
    %c0_i32_0 = arith.constant 0 : i32
    %c0_i32_1 = arith.constant 0 : i32
    return %arg0, %c0_i32, %c0_i32_0 : i32, i32, i32
  }
}

</mosaic_0001>

<llo_original>
// kernel: tpu_custom_call.1
$region0: #{tpu_custom_call.1}
  #allocation0 [shape = 'u32[]', space=smem, size = 0x4, offset = 0x4, fixed_abs, tag = 'smem constant byte address 0x4 - core index']
  #allocation1 [shape = 'u32[144,128]{1,0:T(1,128)}', space=vmem, size = 0x12000, scoped, tag = 'internal scratch']
  %s0 = inlined_call_operand.vmem [shape: f32[2,16,32], index: 0, kind: input, shape index: {}]
  %s1 = inlined_call_operand.vmem [shape: f32[32,8], index: 1, kind: input, shape index: {}]
  %s2 = inlined_call_operand.vmem [shape: f32[1,8], index: 2, kind: input, shape index: {}]
  %s3 = inlined_call_operand.vmem [shape: f32[8,32], index: 3, kind: input, shape index: {}]
  %s4 = inlined_call_operand.vmem [shape: f32[1,32], index: 4, kind: input, shape index: {}]
  %s5 = inlined_call_operand.vmem [shape: f32[32,8], index: 5, kind: input, shape index: {}]
  %s6 = inlined_call_operand.vmem [shape: f32[1,8], index: 6, kind: input, shape index: {}]
  %s7 = inlined_call_operand.vmem [shape: f32[8,32], index: 7, kind: input, shape index: {}]
  %s8 = inlined_call_operand.vmem [shape: f32[1,32], index: 8, kind: input, shape index: {}]
  %s9 = inlined_call_operand.hbm [shape: f32[2,16,32], index: 9, kind: output, shape index: {}]
  %s10 = sld [smem:[#allocation0]]
  $region46: #{tpu_custom_call.1} parent=0
    _
  %s12 = ssub.s32 1, %s10
  %s13 = scalar_select 0, %s12, %s10
  $region1: #{tpu_custom_call.1} parent=0
    #allocation2 [shape = 'u8[16384]{0}', space=vmem, size = 0x4000, scoped, tag = 'output window, operand 0, single buffered']
    #allocation3 [shape = 's32[1]{0}', space=sflag, size = 0x4, scoped, tag = 'scoped memory for tpu_custom_call.1']
    %14 = vsyncpa [#allocation3], 0
    // Predicated region
    $region2: #{tpu_custom_call.1} parent=1 // pred_check
      _
    $region3: #{tpu_custom_call.1} parent=1 // pred_check_branch
      %16 = sbr.rel (0) target = $region5
    $region4: #{tpu_custom_call.1} parent=1 // pred_region
      _
    $region5: #{tpu_custom_call.1} parent=1 // pred_fallthru
      _
    // Predicated region
    $region6: #{tpu_custom_call.1} parent=1 // pred_check
      _
    $region7: #{tpu_custom_call.1} parent=1 // pred_check_branch
      %18 = sbr.rel (0) target = $region9
    $region8: #{tpu_custom_call.1} parent=1 // pred_region
      _
    $region9: #{tpu_custom_call.1} parent=1 // pred_fallthru
      _
    // Predicated region
    $region10: #{tpu_custom_call.1} parent=1 // pred_check
      _
    $region11: #{tpu_custom_call.1} parent=1 // pred_check_branch
      %20 = sbr.rel (0) target = $region13
    $region12: #{tpu_custom_call.1} parent=1 // pred_region
      _
    $region13: #{tpu_custom_call.1} parent=1 // pred_fallthru
      _
    // Predicated region
    $region14: #{tpu_custom_call.1} parent=1 // pred_check
      _
    $region15: #{tpu_custom_call.1} parent=1 // pred_check_branch
      %22 = sbr.rel (0) target = $region17
    $region16: #{tpu_custom_call.1} parent=1 // pred_region
      _
    $region17: #{tpu_custom_call.1} parent=1 // pred_fallthru
      _
    // Predicated region
    $region18: #{tpu_custom_call.1} parent=1 // pred_check
      _
    $region19: #{tpu_custom_call.1} parent=1 // pred_check_branch
      %24 = sbr.rel (0) target = $region21
    $region20: #{tpu_custom_call.1} parent=1 // pred_region
      _
    $region21: #{tpu_custom_call.1} parent=1 // pred_fallthru
      _
    // Predicated region
    $region22: #{tpu_custom_call.1} parent=1 // pred_check
      _
    $region23: #{tpu_custom_call.1} parent=1 // pred_check_branch
      %26 = sbr.rel (0) target = $region25
    $region24: #{tpu_custom_call.1} parent=1 // pred_region
      _
    $region25: #{tpu_custom_call.1} parent=1 // pred_fallthru
      _
    // Predicated region
    $region26: #{tpu_custom_call.1} parent=1 // pred_check
      _
    $region27: #{tpu_custom_call.1} parent=1 // pred_check_branch
      %28 = sbr.rel (0) target = $region29
    $region28: #{tpu_custom_call.1} parent=1 // pred_region
      _
    $region29: #{tpu_custom_call.1} parent=1 // pred_fallthru
      _
    // Predicated region
    $region30: #{tpu_custom_call.1} parent=1 // pred_check
      _
    $region31: #{tpu_custom_call.1} parent=1 // pred_check_branch
      %30 = sbr.rel (0) target = $region33
    $region32: #{tpu_custom_call.1} parent=1 // pred_region
      _
    $region33: #{tpu_custom_call.1} parent=1 // pred_fallthru
      _
    // Predicated region
    $region34: #{tpu_custom_call.1} parent=1 // pred_check
      _
    $region35: #{tpu_custom_call.1} parent=1 // pred_check_branch
      %32 = sbr.rel (0) target = $region37
    $region36: #{tpu_custom_call.1} parent=1 // pred_region
      _
    $region37: #{tpu_custom_call.1} parent=1 // pred_fallthru
      _
    %v33 = vld [vmem:[%s0] sm:$0xff]
    %v34 = vld [vmem:[%s0 + $0x8] sm:$0xff]
    %v35 = vld [vmem:[%s0 + $0x10] sm:$0xff]
    %v36 = vld [vmem:[%s0 + $0x18] sm:$0xff]
    %vm37 = vcmask 261120
    %v38 = vsel %vm37, %v33, 0.0
    %v39 = vsel %vm37, %v34, 0.0
    %v40 = vadd.f32 %v38, %v39
    %v41 = vrot.slane %v40, 4
    %v42 = vadd.f32 %v40, %v41
    %v43 = vrot.slane %v42, 2
    %v44 = vadd.f32 %v42, %v43
    %v45 = vrot.slane %v44, 1
    %v46 = vadd.f32 %v44, %v45
    %v47 = vsel %vm37, %v35, 0.0
    %v48 = vsel %vm37, %v36, 0.0
    %v49 = vadd.f32 %v47, %v48
    %v50 = vrot.slane %v49, 4
    %v51 = vadd.f32 %v49, %v50
    %v52 = vrot.slane %v51, 2
    %v53 = vadd.f32 %v51, %v52
    %v54 = vrot.slane %v53, 1
    %v55 = vadd.f32 %v53, %v54
    %v56 = vmul.f32 %v46, 0.0625
    %v57 = vmul.f32 %v55, 0.0625
    %v58 = vld [vmem:[%s1] sm:$0xff]
    %v59 = vld [vmem:[%s1 + $0x8] sm:$0xff]
    %v60 = vld [vmem:[%s1 + $0x10] sm:$0xff]
    %v61 = vld [vmem:[%s1 + $0x18] sm:$0xff]
    %v62 = vld [vmem:[%s2] sm:$0x1]
    %v64 = vlaneseq
    %v65 = vshrl.u32 %v64, 7
    %v66 = vsub.s32 0, %v65
    %v67 = vrot.slane %v62, %v66
    %vm71 = vcmask 1041409
    %v72 = vsel %vm71, %v57, %v56
    %v73 = vsel %vm37, %v72, 0
    %75 = vmatprep.subr.mxu0 0.0
    %76 = vmatpush1.msra.mxu0 %v58
    %77 = vmatprep.subr.mxu0 0.0
    %78 = vmatpush1.msra.mxu0 %v59
    %79 = vmatprep.subr.mxu0 0.0
    %80 = vmatpush1.msra.mxu0 %v60
    %81 = vmatprep.subr.mxu0 0.0
    %82 = vmatpush1.msra.mxu0 %v61
    %83 = vmatprep.subr.mxu0 0.0
    %84 = vmatpush1.msra.mxu0 0.0
    %85 = vmatprep.subr.mxu0 0.0
    %86 = vmatpush1.msra.mxu0 0.0
    %87 = vmatprep.subr.mxu0 0.0
    %88 = vmatpush1.msra.mxu0 0.0
    %89 = vmatprep.subr.mxu0 0.0
    %90 = vmatpush1.msra.mxu0 0.0
    %91 = vmatprep.subr.mxu0 0.0
    %92 = vmatpush1.msra.mxu0 0.0
    %93 = vmatprep.subr.mxu0 0.0
    %94 = vmatpush1.msra.mxu0 0.0
    %95 = vmatprep.subr.mxu0 0.0
    %96 = vmatpush1.msra.mxu0 0.0
    %97 = vmatprep.subr.mxu0 0.0
    %98 = vmatpush1.msra.mxu0 0.0
    %99 = vmatprep.subr.mxu0 0.0
    %100 = vmatpush1.msra.mxu0 0.0
    %101 = vmatprep.subr.mxu0 0.0
    %102 = vmatpush1.msra.mxu0 0.0
    %103 = vmatprep.subr.mxu0 0.0
    %104 = vmatpush1.msra.mxu0 0.0
    %105 = vmatprep.subr.mxu0 0.0
    %106 = vmatpush1.msra.mxu0 0.0
    %107 = vmatprep.subr.mxu0 0.0
    %108 = vmatpush1.msra.mxu0 0.0
    %109 = vmatprep.subr.mxu0 0.0
    %110 = vmatpush1.msra.mxu0 0.0
    %111 = vmatprep.subr.mxu0 0.0
    %112 = vmatpush1.msra.mxu0 0.0
    %113 = vmatprep.subr.mxu0 0.0
    %114 = vmatpush1.msra.mxu0 0.0
    %115 = vmatprep.subr.mxu0 0.0
    %116 = vmatpush1.msra.mxu0 0.0
    %117 = vmatprep.subr.mxu0 0.0
    %118 = vmatpush1.msra.mxu0 0.0
    %119 = vmatprep.subr.mxu0 0.0
    %120 = vmatpush1.msra.mxu0 0.0
    %121 = vmatprep.subr.mxu0 0.0
    %122 = vmatpush1.msra.mxu0 0.0
    %123 = vmatprep.subr.mxu0 0.0
    %124 = vmatpush1.msra.mxu0 0.0
    %125 = vmatprep.subr.mxu0 0.0
    %126 = vmatpush1.msra.mxu0 0.0
    %127 = vmatprep.subr.mxu0 0.0
    %128 = vmatpush1.msra.mxu0 0.0
    %129 = vmatprep.subr.mxu0 0.0
    %130 = vmatpush1.msra.mxu0 0.0
    %131 = vmatprep.subr.mxu0 0.0
    %132 = vmatpush1.msra.mxu0 0.0
    %133 = vmatprep.subr.mxu0 0.0
    %134 = vmatpush1.msra.mxu0 0.0
    %135 = vmatprep.subr.mxu0 0.0
    %136 = vmatpush1.msra.mxu0 0.0
    %137 = vmatprep.subr.mxu0 0.0
    %138 = vmatpush1.msra.mxu0 0.0
    %139 = vmatprep.mubr.f32.mxu0 0.0
    %140 = vmatmul.mubr.f32.gmra.mrb[0].mxu0 %v73
    %v141 = vpop.f32.mrb[0].mxu0
    %v142 = vadd.f32 %v67, %v141
    %v143 = vpop.f32.mrb[0].mxu0
    %144 = vdwg.mxu0
    %v145 = vmax.f32 %v142, 0.0
    %v146 = vld [vmem:[%s3] sm:$0xff]
    %v147 = vld [vmem:[%s4] sm:$0x1]
    %v149 = vlaneseq
    %v150 = vshrl.u32 %v149, 7
    %v151 = vsub.s32 0, %v150
    %v152 = vrot.slane %v147, %v151
    %vm154 = vcmask 64512
    %v156 = vsel %vm154, %v145, 0
    %158 = vmatprep.subr.mxu0 0.0
    %159 = vmatpush1.msra.mxu0 %v146
    %160 = vmatprep.subr.mxu0 0.0
    %161 = vmatpush1.msra.mxu0 0.0
    %162 = vmatprep.subr.mxu0 0.0
    %163 = vmatpush1.msra.mxu0 0.0
    %164 = vmatprep.subr.mxu0 0.0
    %165 = vmatpush1.msra.mxu0 0.0
    %166 = vmatprep.subr.mxu0 0.0
    %167 = vmatpush1.msra.mxu0 0.0
    %168 = vmatprep.subr.mxu0 0.0
    %169 = vmatpush1.msra.mxu0 0.0
    %170 = vmatprep.subr.mxu0 0.0
    %171 = vmatpush1.msra.mxu0 0.0
    %172 = vmatprep.subr.mxu0 0.0
    %173 = vmatpush1.msra.mxu0 0.0
    %174 = vmatprep.subr.mxu0 0.0
    %175 = vmatpush1.msra.mxu0 0.0
    %176 = vmatprep.subr.mxu0 0.0
    %177 = vmatpush1.msra.mxu0 0.0
    %178 = vmatprep.subr.mxu0 0.0
    %179 = vmatpush1.msra.mxu0 0.0
    %180 = vmatprep.subr.mxu0 0.0
    %181 = vmatpush1.msra.mxu0 0.0
    %182 = vmatprep.subr.mxu0 0.0
    %183 = vmatpush1.msra.mxu0 0.0
    %184 = vmatprep.subr.mxu0 0.0
    %185 = vmatpush1.msra.mxu0 0.0
    %186 = vmatprep.subr.mxu0 0.0
    %187 = vmatpush1.msra.mxu0 0.0
    %188 = vmatprep.subr.mxu0 0.0
    %189 = vmatpush1.msra.mxu0 0.0
    %190 = vmatprep.subr.mxu0 0.0
    %191 = vmatpush1.msra.mxu0 0.0
    %192 = vmatprep.subr.mxu0 0.0
    %193 = vmatpush1.msra.mxu0 0.0
    %194 = vmatprep.subr.mxu0 0.0
    %195 = vmatpush1.msra.mxu0 0.0
    %196 = vmatprep.subr.mxu0 0.0
    %197 = vmatpush1.msra.mxu0 0.0
    %198 = vmatprep.subr.mxu0 0.0
    %199 = vmatpush1.msra.mxu0 0.0
    %200 = vmatprep.subr.mxu0 0.0
    %201 = vmatpush1.msra.mxu0 0.0
    %202 = vmatprep.subr.mxu0 0.0
    %203 = vmatpush1.msra.mxu0 0.0
    %204 = vmatprep.subr.mxu0 0.0
    %205 = vmatpush1.msra.mxu0 0.0
    %206 = vmatprep.subr.mxu0 0.0
    %207 = vmatpush1.msra.mxu0 0.0
    %208 = vmatprep.subr.mxu0 0.0
    %209 = vmatpush1.msra.mxu0 0.0
    %210 = vmatprep.subr.mxu0 0.0
    %211 = vmatpush1.msra.mxu0 0.0
    %212 = vmatprep.subr.mxu0 0.0
    %213 = vmatpush1.msra.mxu0 0.0
    %214 = vmatprep.subr.mxu0 0.0
    %215 = vmatpush1.msra.mxu0 0.0
    %216 = vmatprep.subr.mxu0 0.0
    %217 = vmatpush1.msra.mxu0 0.0
    %218 = vmatprep.subr.mxu0 0.0
    %219 = vmatpush1.msra.mxu0 0.0
    %220 = vmatprep.subr.mxu0 0.0
    %221 = vmatpush1.msra.mxu0 0.0
    %222 = vmatprep.mubr.f32.mxu0 0.0
    %223 = vmatmul.mubr.f32.gmra.mrb[0].mxu0 %v156
    %v224 = vpop.f32.mrb[0].mxu0
    %v225 = vadd.f32 %v152, %v224
    %v226 = vpop.f32.mrb[0].mxu0
    %227 = vdwg.mxu0
    %v228 = vld [vmem:[%s5] sm:$0xff]
    %v229 = vld [vmem:[%s5 + $0x8] sm:$0xff]
    %v230 = vld [vmem:[%s5 + $0x10] sm:$0xff]
    %v231 = vld [vmem:[%s5 + $0x18] sm:$0xff]
    %v232 = vld [vmem:[%s6] sm:$0x1]
    %v234 = vlaneseq
    %v235 = vshrl.u32 %v234, 7
    %v236 = vsub.s32 0, %v235
    %v237 = vrot.slane %v232, %v236
    %v240 = vsel %vm37, %v33, 0
    %v243 = vsel %vm37, %v34, 0
    %v246 = vsel %vm37, %v35, 0
    %v249 = vsel %vm37, %v36, 0
    %251 = vmatprep.subr.mxu0 0.0
    %252 = vmatpush1.msra.mxu0 %v228
    %253 = vmatprep.subr.mxu0 0.0
    %254 = vmatpush1.msra.mxu0 %v229
    %255 = vmatprep.subr.mxu0 0.0
    %256 = vmatpush1.msra.mxu0 %v230
    %257 = vmatprep.subr.mxu0 0.0
    %258 = vmatpush1.msra.mxu0 %v231
    %259 = vmatprep.subr.mxu0 0.0
    %260 = vmatpush1.msra.mxu0 0.0
    %261 = vmatprep.subr.mxu0 0.0
    %262 = vmatpush1.msra.mxu0 0.0
    %263 = vmatprep.subr.mxu0 0.0
    %264 = vmatpush1.msra.mxu0 0.0
    %265 = vmatprep.subr.mxu0 0.0
    %266 = vmatpush1.msra.mxu0 0.0
    %267 = vmatprep.subr.mxu0 0.0
    %268 = vmatpush1.msra.mxu0 0.0
    %269 = vmatprep.subr.mxu0 0.0
    %270 = vmatpush1.msra.mxu0 0.0
    %271 = vmatprep.subr.mxu0 0.0
    %272 = vmatpush1.msra.mxu0 0.0
    %273 = vmatprep.subr.mxu0 0.0
    %274 = vmatpush1.msra.mxu0 0.0
    %275 = vmatprep.subr.mxu0 0.0
    %276 = vmatpush1.msra.mxu0 0.0
    %277 = vmatprep.subr.mxu0 0.0
    %278 = vmatpush1.msra.mxu0 0.0
    %279 = vmatprep.subr.mxu0 0.0
    %280 = vmatpush1.msra.mxu0 0.0
    %281 = vmatprep.subr.mxu0 0.0
    %282 = vmatpush1.msra.mxu0 0.0
    %283 = vmatprep.subr.mxu0 0.0
    %284 = vmatpush1.msra.mxu0 0.0
    %285 = vmatprep.subr.mxu0 0.0
    %286 = vmatpush1.msra.mxu0 0.0
    %287 = vmatprep.subr.mxu0 0.0
    %288 = vmatpush1.msra.mxu0 0.0
    %289 = vmatprep.subr.mxu0 0.0
    %290 = vmatpush1.msra.mxu0 0.0
    %291 = vmatprep.subr.mxu0 0.0
    %292 = vmatpush1.msra.mxu0 0.0
    %293 = vmatprep.subr.mxu0 0.0
    %294 = vmatpush1.msra.mxu0 0.0
    %295 = vmatprep.subr.mxu0 0.0
    %296 = vmatpush1.msra.mxu0 0.0
    %297 = vmatprep.subr.mxu0 0.0
    %298 = vmatpush1.msra.mxu0 0.0
    %299 = vmatprep.subr.mxu0 0.0
    %300 = vmatpush1.msra.mxu0 0.0
    %301 = vmatprep.subr.mxu0 0.0
    %302 = vmatpush1.msra.mxu0 0.0
    %303 = vmatprep.subr.mxu0 0.0
    %304 = vmatpush1.msra.mxu0 0.0
    %305 = vmatprep.subr.mxu0 0.0
    %306 = vmatpush1.msra.mxu0 0.0
    %307 = vmatprep.subr.mxu0 0.0
    %308 = vmatpush1.msra.mxu0 0.0
    %309 = vmatprep.subr.mxu0 0.0
    %310 = vmatpush1.msra.mxu0 0.0
    %311 = vmatprep.subr.mxu0 0.0
    %312 = vmatpush1.msra.mxu0 0.0
    %313 = vmatprep.subr.mxu0 0.0
    %314 = vmatpush1.msra.mxu0 0.0
    %315 = vmatprep.mubr.f32.mxu0 0.0
    %316 = vmatmul.mubr.f32.gmra.mrb[0].mxu0 %v240
    %v317 = vpop.f32.mrb[0].mxu0
    %v318 = vadd.f32 %v237, %v317
    %v319 = vpop.f32.mrb[0].mxu0
    %320 = vmatprep.mubr.f32.mxu0 0.0
    %321 = vmatmul.mubr.f32.gmra.mrb[0].mxu0 %v243
    %v322 = vpop.f32.mrb[0].mxu0
    %v323 = vadd.f32 %v237, %v322
    %v324 = vpop.f32.mrb[0].mxu0
    %325 = vmatprep.mubr.f32.mxu0 0.0
    %326 = vmatmul.mubr.f32.gmra.mrb[0].mxu0 %v246
    %v327 = vpop.f32.mrb[0].mxu0
    %v328 = vadd.f32 %v237, %v327
    %v329 = vpop.f32.mrb[0].mxu0
    %330 = vmatprep.mubr.f32.mxu0 0.0
    %331 = vmatmul.mubr.f32.gmra.mrb[0].mxu0 %v249
    %v332 = vpop.f32.mrb[0].mxu0
    %v333 = vadd.f32 %v237, %v332
    %v334 = vpop.f32.mrb[0].mxu0
    %335 = vdwg.mxu0
    %v336 = vmax.f32 %v318, 0.0
    %v337 = vmax.f32 %v323, 0.0
    %v338 = vmax.f32 %v328, 0.0
    %v339 = vmax.f32 %v333, 0.0
    %v340 = vld [vmem:[%s7] sm:$0xff]
    %v341 = vld [vmem:[%s8] sm:$0x1]
    %v343 = vlaneseq
    %v344 = vshrl.u32 %v343, 7
    %v345 = vsub.s32 0, %v344
    %v346 = vrot.slane %v341, %v345
    %v349 = vsel %vm154, %v336, 0
    %v352 = vsel %vm154, %v337, 0
    %v355 = vsel %vm154, %v338, 0
    %v358 = vsel %vm154, %v339, 0
    %360 = vmatprep.subr.mxu0 0.0
    %361 = vmatpush1.msra.mxu0 %v340
    %362 = vmatprep.subr.mxu0 0.0
    %363 = vmatpush1.msra.mxu0 0.0
    %364 = vmatprep.subr.mxu0 0.0
    %365 = vmatpush1.msra.mxu0 0.0
    %366 = vmatprep.subr.mxu0 0.0
    %367 = vmatpush1.msra.mxu0 0.0
    %368 = vmatprep.subr.mxu0 0.0
    %369 = vmatpush1.msra.mxu0 0.0
    %370 = vmatprep.subr.mxu0 0.0
    %371 = vmatpush1.msra.mxu0 0.0
    %372 = vmatprep.subr.mxu0 0.0
    %373 = vmatpush1.msra.mxu0 0.0
    %374 = vmatprep.subr.mxu0 0.0
    %375 = vmatpush1.msra.mxu0 0.0
    %376 = vmatprep.subr.mxu0 0.0
    %377 = vmatpush1.msra.mxu0 0.0
    %378 = vmatprep.subr.mxu0 0.0
    %379 = vmatpush1.msra.mxu0 0.0
    %380 = vmatprep.subr.mxu0 0.0
    %381 = vmatpush1.msra.mxu0 0.0
    %382 = vmatprep.subr.mxu0 0.0
    %383 = vmatpush1.msra.mxu0 0.0
    %384 = vmatprep.subr.mxu0 0.0
    %385 = vmatpush1.msra.mxu0 0.0
    %386 = vmatprep.subr.mxu0 0.0
    %387 = vmatpush1.msra.mxu0 0.0
    %388 = vmatprep.subr.mxu0 0.0
    %389 = vmatpush1.msra.mxu0 0.0
    %390 = vmatprep.subr.mxu0 0.0
    %391 = vmatpush1.msra.mxu0 0.0
    %392 = vmatprep.subr.mxu0 0.0
    %393 = vmatpush1.msra.mxu0 0.0
    %394 = vmatprep.subr.mxu0 0.0
    %395 = vmatpush1.msra.mxu0 0.0
    %396 = vmatprep.subr.mxu0 0.0
    %397 = vmatpush1.msra.mxu0 0.0
    %398 = vmatprep.subr.mxu0 0.0
    %399 = vmatpush1.msra.mxu0 0.0
    %400 = vmatprep.subr.mxu0 0.0
    %401 = vmatpush1.msra.mxu0 0.0
    %402 = vmatprep.subr.mxu0 0.0
    %403 = vmatpush1.msra.mxu0 0.0
    %404 = vmatprep.subr.mxu0 0.0
    %405 = vmatpush1.msra.mxu0 0.0
    %406 = vmatprep.subr.mxu0 0.0
    %407 = vmatpush1.msra.mxu0 0.0
    %408 = vmatprep.subr.mxu0 0.0
    %409 = vmatpush1.msra.mxu0 0.0
    %410 = vmatprep.subr.mxu0 0.0
    %411 = vmatpush1.msra.mxu0 0.0
    %412 = vmatprep.subr.mxu0 0.0
    %413 = vmatpush1.msra.mxu0 0.0
    %414 = vmatprep.subr.mxu0 0.0
    %415 = vmatpush1.msra.mxu0 0.0
    %416 = vmatprep.subr.mxu0 0.0
    %417 = vmatpush1.msra.mxu0 0.0
    %418 = vmatprep.subr.mxu0 0.0
    %419 = vmatpush1.msra.mxu0 0.0
    %420 = vmatprep.subr.mxu0 0.0
    %421 = vmatpush1.msra.mxu0 0.0
    %422 = vmatprep.subr.mxu0 0.0
    %423 = vmatpush1.msra.mxu0 0.0
    %424 = vmatprep.mubr.f32.mxu0 0.0
    %425 = vmatmul.mubr.f32.gmra.mrb[0].mxu0 %v349
    %v426 = vpop.f32.mrb[0].mxu0
    %v427 = vadd.f32 %v346, %v426
    %v428 = vpop.f32.mrb[0].mxu0
    %429 = vmatprep.mubr.f32.mxu0 0.0
    %430 = vmatmul.mubr.f32.gmra.mrb[0].mxu0 %v352
    %v431 = vpop.f32.mrb[0].mxu0
    %v432 = vadd.f32 %v346, %v431
    %v433 = vpop.f32.mrb[0].mxu0
    %434 = vmatprep.mubr.f32.mxu0 0.0
    %435 = vmatmul.mubr.f32.gmra.mrb[0].mxu0 %v355
    %v436 = vpop.f32.mrb[0].mxu0
    %v437 = vadd.f32 %v346, %v436
    %v438 = vpop.f32.mrb[0].mxu0
    %439 = vmatprep.mubr.f32.mxu0 0.0
    %440 = vmatmul.mubr.f32.gmra.mrb[0].mxu0 %v358
    %v441 = vpop.f32.mrb[0].mxu0
    %v442 = vadd.f32 %v346, %v441
    %v443 = vpop.f32.mrb[0].mxu0
    %444 = vdwg.mxu0
    %v447 = vunpack.c.l.s4 1966171168
    %v448 = vunpack.c.0.s8 %v447
    %v449 = vlaneseq
    %v450 = vshrl.u32 %v449, 7
    %v451 = vsub.s32 %v448, %v450
    %v452 = vrot.slane %v225, %v451
    %v453 = vcombine.high %v452, %v452
    %v455 = vunpack.c.l.s4 1966171168
    %v456 = vunpack.c.0.s8 %v455
    %v457 = vlaneseq
    %v458 = vshrl.u32 %v457, 7
    %v459 = vsub.s32 %v456, %v458
    %v460 = vrot.slane %v452, %v459
    %v462 = vunpack.c.l.s4 1966171168
    %v463 = vunpack.c.0.s8 %v462
    %v464 = vlaneseq
    %v465 = vshrl.u32 %v464, 7
    %v466 = vsub.s32 %v463, %v465
    %v467 = vrot.slane %v453, %v466
    %v468 = vlaneseq
    %v469 = vshrl.u32 %v468, 7
    %v470 = vsub.s32 0, %v469
    %v471 = vrot.slane %v460, %v470
    %v472 = vlaneseq
    %v473 = vshrl.u32 %v472, 7
    %v474 = vsub.s32 0, %v473
    %v475 = vrot.slane %v467, %v474
    %v478 = vadd.f32 %v471, %v427
    %v479 = vadd.f32 %v471, %v432
    %v480 = vadd.f32 %v475, %v437
    %v481 = vadd.f32 %v475, %v442
    %v482 = vxor.u32 %v478, 2147483648
    %v483 = vxor.u32 %v479, 2147483648
    %v484 = vxor.u32 %v480, 2147483648
    %v485 = vxor.u32 %v481, 2147483648
    %v486 = vmul.f32 %v482, 1.442695
    %v487 = vpow.pop %v486
    %v488 = vmul.f32 %v483, 1.442695
    %v489 = vpow.pop %v488
    %v490 = vmul.f32 %v484, 1.442695
    %v491 = vpow.pop %v490
    %v492 = vmul.f32 %v485, 1.442695
    %v493 = vpow.pop %v492
    %v494 = vadd.f32 %v487, 1.0
    %v495 = vadd.f32 %v489, 1.0
    %v496 = vadd.f32 %v491, 1.0
    %v497 = vadd.f32 %v493, 1.0
    %v498 = vrcp.pop %v494
    %v499 = vmul.f32 1.0, %v498
    %v500 = vrcp.pop %v495
    %v501 = vmul.f32 1.0, %v500
    %v502 = vrcp.pop %v496
    %v503 = vmul.f32 1.0, %v502
    %v504 = vrcp.pop %v497
    %v505 = vmul.f32 1.0, %v504
    %v506 = vmul.f32 %v499, %v33
    %v507 = vmul.f32 %v501, %v34
    %v508 = vmul.f32 %v503, %v35
    %v509 = vmul.f32 %v505, %v36
    %510 = vst.msk [vmem:[#allocation2] sm:$0xff] %vm37, %v506
    %511 = vst.msk [vmem:[#allocation2 + $0x8] sm:$0xff] %vm37, %v507
    %512 = vst.msk [vmem:[#allocation2 + $0x10] sm:$0xff] %vm37, %v508
    %513 = vst.msk [vmem:[#allocation2 + $0x18] sm:$0xff] %vm37, %v509
    // Predicated region
    $region38: #{tpu_custom_call.1} parent=1 // pred_check
      _
    $region39: #{tpu_custom_call.1} parent=1 // pred_check_branch
      %515 = sbr.rel (0) target = $region41
    $region40: #{tpu_custom_call.1} parent=1 // pred_region
      %s517 = ssub.s32 512, 512
      %518 = vsyncadd [#allocation3], %s517
      %s519 = sshll.u32 [#allocation2], 4
      %s520 = int_to_ptr.vmem [resolvable:$true] %s519
      %525 = dma.vmem_to_hbm [thread:$0]  %s520, 512, %s9, [#allocation3], 128, 128, 8
    $region41: #{tpu_custom_call.1} parent=1 // pred_fallthru
      _
    // Predicated region
    $region42: #{tpu_custom_call.1} parent=1 // pred_check
      _
    $region43: #{tpu_custom_call.1} parent=1 // pred_check_branch
      %527 = sbr.rel (0) target = $region45
    $region44: #{tpu_custom_call.1} parent=1 // pred_region
      %528 = dma.done [#allocation3], 512
    $region45: #{tpu_custom_call.1} parent=1 // pred_fallthru
      _
    %529 = vsyncpa [#allocation3], 1

</llo_original>
